<compile_context>
chip_gen: v5e
topology: v5e:2x2
jax: 0.10.0
libtpu: 0.0.40
codegen_flags: <defaults>
</compile_context>

<pallas_src>
import functools

import jax
import jax.numpy as jnp
from jax.experimental import pallas as pl
from jax.experimental.pallas import tpu as pltpu

# Logical (PyTorch) feature sizes and their lane-padded versions.
D_IN = 28 * 28          # 784
H1, H1_PAD = 300, 384
H2, H2_PAD = 100, 128
D_OUT, D_OUT_PAD = 10, 128


def _round_up(n, m):
    return ((n + m - 1) // m) * m


def lenet300_kernel(x_ref, w1_ref, b1_ref, w2_ref, b2_ref, w3_ref, b3_ref, o_ref):
    # x_ref: (TB, 784) bf16; weights bf16; biases f32; o_ref: (TB, 128) f32.
    x = x_ref[...]
    h1 = jnp.dot(x, w1_ref[...], preferred_element_type=jnp.float32) + b1_ref[...]
    h1 = jnp.maximum(h1, 0.0).astype(jnp.bfloat16)
    h2 = jnp.dot(h1, w2_ref[...], preferred_element_type=jnp.float32) + b2_ref[...]
    h2 = jnp.maximum(h2, 0.0).astype(jnp.bfloat16)
    out = jnp.dot(h2, w3_ref[...], preferred_element_type=jnp.float32) + b3_ref[...]
    o_ref[...] = out.astype(o_ref.dtype)


@functools.partial(jax.jit, static_argnames=())
def lenet300_forward(x, w1, b1, w2, b2, w3, b3):
    """x: (B, 1, 28, 28) NCHW. Weights stored (in, out) = transpose of PyTorch,
    pre-padded to lane multiples. Returns (B, 10) f32 logits."""
    B = x.shape[0]
    x2d = x.reshape(B, -1).astype(jnp.bfloat16)          # (B, 784) bf16

    # Batch tile: large enough to amortize per-step overhead, small enough for
    # v7x's 64 MiB physical / 32 MiB scoped VMEM.  Multiple of 16 (bf16 sublane pack).
    if B >= 1024:
        TB = 1024
    else:
        TB = _round_up(B, 16)
    B_pad = _round_up(B, TB)
    if B_pad != B:
        x2d = jnp.pad(x2d, ((0, B_pad - B), (0, 0)))

    grid = (B_pad // TB,)

    flops = 2 * B_pad * (D_IN * H1_PAD + H1_PAD * H2_PAD + H2_PAD * D_OUT_PAD)
    bytes_accessed = (
        x2d.size * 2
        + (w1.size + w2.size + w3.size) * 2
        + (b1.size + b2.size + b3.size) * 4
        + B_pad * D_OUT_PAD * 4
    )

    out_pad = pl.pallas_call(
        lenet300_kernel,
        out_shape=jax.ShapeDtypeStruct((B_pad, D_OUT_PAD), jnp.float32),
        grid=grid,
        in_specs=[
            pl.BlockSpec((TB, D_IN), lambda i: (i, 0)),          # x tile
            pl.BlockSpec((D_IN, H1_PAD), lambda i: (0, 0)),      # w1 (resident)
            pl.BlockSpec((1, H1_PAD), lambda i: (0, 0)),         # b1
            pl.BlockSpec((H1_PAD, H2_PAD), lambda i: (0, 0)),    # w2
            pl.BlockSpec((1, H2_PAD), lambda i: (0, 0)),         # b2
            pl.BlockSpec((H2_PAD, D_OUT_PAD), lambda i: (0, 0)), # w3
            pl.BlockSpec((1, D_OUT_PAD), lambda i: (0, 0)),      # b3
        ],
        out_specs=pl.BlockSpec((TB, D_OUT_PAD), lambda i: (i, 0)),
        compiler_params=pltpu.CompilerParams(
            dimension_semantics=("parallel",),
            vmem_limit_bytes=32 * 1024 * 1024,
        ),
        cost_estimate=pl.CostEstimate(
            flops=flops, transcendentals=0, bytes_accessed=bytes_accessed
        ),
    )(x2d, w1, b1, w2, b2, w3, b3)

    return out_pad[:B, :D_OUT]


# ----------------------------- parameter init ------------------------------

def xavier_uniform(key, fan_in, fan_out, pad_out, dtype=jnp.bfloat16):
    """torch.nn.init.xavier_uniform_ bound: sqrt(6/(fan_in+fan_out)); stored (in, out),
    zero-padded along the out dim to `pad_out`."""
    bound = (6.0 / (fan_in + fan_out)) ** 0.5
    w = jax.random.uniform(key, (fan_in, fan_out), dtype=jnp.float32,
                           minval=-bound, maxval=bound)
    w = jnp.pad(w, ((0, 0), (0, pad_out - fan_out)))
    return w.astype(dtype)


def linear_bias_init(key, fan_in, fan_out, pad_out, dtype=jnp.float32):
    """PyTorch nn.Linear default bias init: U(-1/sqrt(fan_in), 1/sqrt(fan_in))."""
    bound = 1.0 / (fan_in ** 0.5)
    b = jax.random.uniform(key, (1, fan_out), dtype=jnp.float32,
                           minval=-bound, maxval=bound)
    b = jnp.pad(b, ((0, 0), (0, pad_out - fan_out)))
    return b.astype(dtype)


def init_params(key):
    k = jax.random.split(key, 6)
    w1 = xavier_uniform(k[0], D_IN, H1, H1_PAD)
    b1 = linear_bias_init(k[1], D_IN, H1, H1_PAD)
    w2 = xavier_uniform(k[2], H1_PAD, H2, H2_PAD)   # extra rows multiply zeros of h1 pad
    b2 = linear_bias_init(k[3], H1, H2, H2_PAD)
    w3 = xavier_uniform(k[4], H2_PAD, D_OUT, D_OUT_PAD)
    b3 = linear_bias_init(k[5], H2, D_OUT, D_OUT_PAD)
    return w1, b1, w2, b2, w3, b3


# ------------------------------- reference ---------------------------------

def reference_forward(x, w1, b1, w2, b2, w3, b3):
    """Pure-JAX reference using the same bf16 weights/inputs, f32 math."""
    B = x.shape[0]
    hp = jax.lax.Precision.HIGHEST
    h = x.reshape(B, -1).astype(jnp.bfloat16).astype(jnp.float32)
    h = jnp.maximum(jnp.dot(h, w1.astype(jnp.float32), precision=hp) + b1, 0.0)
    h = jnp.maximum(jnp.dot(h, w2.astype(jnp.float32), precision=hp) + b2, 0.0)
    out = jnp.dot(h, w3.astype(jnp.float32), precision=hp) + b3
    return out[:, :D_OUT]


if __name__ == "__main__":
    key = jax.random.PRNGKey(0)
    k_x, k_p = jax.random.split(key)

    # MNIST-like input: batch=2, NCHW (2, 1, 28, 28) — fc1 requires 28*28 features.
    x = jax.random.normal(k_x, (2, 1, 28, 28), dtype=jnp.float32)
    params = init_params(k_p)

    out = lenet300_forward(x, *params)
    out = jax.block_until_ready(out)

    ref = reference_forward(x, *params)
    assert out.shape == (2, 10), out.shape
    # bf16 operands with f32 accumulation: loosened tolerance vs pure-f32.
    assert jnp.allclose(out, ref, atol=1e-2, rtol=1e-2), "mismatch vs reference"

    print("KERNEL_OK")
</pallas_src>

<mosaic_0001>
module attributes {stable_mosaic.version = 11 : i64} {
  func.func @lenet300_kernel(%arg0: i32, %arg1: memref<16x784xbf16, #tpu.memory_space<vmem>>, %arg2: memref<784x384xbf16, #tpu.memory_space<vmem>>, %arg3: memref<1x384xf32, #tpu.memory_space<vmem>>, %arg4: memref<384x128xbf16, #tpu.memory_space<vmem>>, %arg5: memref<1x128xf32, #tpu.memory_space<vmem>>, %arg6: memref<128x128xbf16, #tpu.memory_space<vmem>>, %arg7: memref<1x128xf32, #tpu.memory_space<vmem>>, %arg8: memref<16x128xf32, #tpu.memory_space<vmem>>) attributes {dimension_semantics = [#tpu.dimension_semantics<parallel>], iteration_bounds = array<i64: 1>, scalar_prefetch = 0 : i64, scratch_operands = 0 : i64, tpu.core_type = #tpu.core_type<tc>, window_params = [{transform_indices = @transform_0, window_bounds = array<i64: 16, 784>}, {pipeline_mode = #tpu.pipeline_mode<synchronous>, transform_indices = @transform_1, window_bounds = array<i64: 784, 384>}, {pipeline_mode = #tpu.pipeline_mode<synchronous>, transform_indices = @transform_2, window_bounds = array<i64: 1, 384>}, {pipeline_mode = #tpu.pipeline_mode<synchronous>, transform_indices = @transform_3, window_bounds = array<i64: 384, 128>}, {pipeline_mode = #tpu.pipeline_mode<synchronous>, transform_indices = @transform_4, window_bounds = array<i64: 1, 128>}, {pipeline_mode = #tpu.pipeline_mode<synchronous>, transform_indices = @transform_5, window_bounds = array<i64: 128, 128>}, {pipeline_mode = #tpu.pipeline_mode<synchronous>, transform_indices = @transform_6, window_bounds = array<i64: 1, 128>}, {transform_indices = @transform_7, window_bounds = array<i64: 16, 128>}]} {
    %c0 = arith.constant 0 : index
    %c0_0 = arith.constant 0 : index
    %0 = vector.load %arg1[%c0, %c0_0] : memref<16x784xbf16, #tpu.memory_space<vmem>>, vector<16x784xbf16>
    %c0_1 = arith.constant 0 : index
    %c0_2 = arith.constant 0 : index
    %1 = vector.load %arg2[%c0_1, %c0_2] : memref<784x384xbf16, #tpu.memory_space<vmem>>, vector<784x384xbf16>
    %cst = arith.constant dense<0.000000e+00> : vector<16x384xf32>
    %2 = tpu.matmul %0, %1, %cst {dimension_numbers = #tpu.dot_dimension_numbers<[1], [0], [0], [1], [0, 0, 1, 1], [], []>} : vector<16x784xbf16>, vector<784x384xbf16>, vector<16x384xf32> -> vector<16x384xf32>
    %c0_3 = arith.constant 0 : index
    %c0_4 = arith.constant 0 : index
    %3 = vector.load %arg3[%c0_3, %c0_4] : memref<1x384xf32, #tpu.memory_space<vmem>>, vector<1x384xf32>
    %4 = vector.broadcast %3 : vector<1x384xf32> to vector<16x384xf32>
    %5 = arith.addf %2, %4 : vector<16x384xf32>
    %cst_5 = arith.constant 0.000000e+00 : f32
    %6 = vector.broadcast %cst_5 : f32 to vector<16x384xf32>
    %7 = arith.maximumf %5, %6 : vector<16x384xf32>
    %8 = arith.truncf %7 : vector<16x384xf32> to vector<16x384xbf16>
    %c0_6 = arith.constant 0 : index
    %c0_7 = arith.constant 0 : index
    %9 = vector.load %arg4[%c0_6, %c0_7] : memref<384x128xbf16, #tpu.memory_space<vmem>>, vector<384x128xbf16>
    %cst_8 = arith.constant dense<0.000000e+00> : vector<16x128xf32>
    %10 = tpu.matmul %8, %9, %cst_8 {dimension_numbers = #tpu.dot_dimension_numbers<[1], [0], [0], [1], [0, 0, 1, 1], [], []>} : vector<16x384xbf16>, vector<384x128xbf16>, vector<16x128xf32> -> vector<16x128xf32>
    %c0_9 = arith.constant 0 : index
    %c0_10 = arith.constant 0 : index
    %11 = vector.load %arg5[%c0_9, %c0_10] : memref<1x128xf32, #tpu.memory_space<vmem>>, vector<1x128xf32>
    %12 = vector.broadcast %11 : vector<1x128xf32> to vector<16x128xf32>
    %13 = arith.addf %10, %12 : vector<16x128xf32>
    %cst_11 = arith.constant 0.000000e+00 : f32
    %14 = vector.broadcast %cst_11 : f32 to vector<16x128xf32>
    %15 = arith.maximumf %13, %14 : vector<16x128xf32>
    %16 = arith.truncf %15 : vector<16x128xf32> to vector<16x128xbf16>
    %c0_12 = arith.constant 0 : index
    %c0_13 = arith.constant 0 : index
    %17 = vector.load %arg6[%c0_12, %c0_13] : memref<128x128xbf16, #tpu.memory_space<vmem>>, vector<128x128xbf16>
    %cst_14 = arith.constant dense<0.000000e+00> : vector<16x128xf32>
    %18 = tpu.matmul %16, %17, %cst_14 {dimension_numbers = #tpu.dot_dimension_numbers<[1], [0], [0], [1], [0, 0, 1, 1], [], []>} : vector<16x128xbf16>, vector<128x128xbf16>, vector<16x128xf32> -> vector<16x128xf32>
    %c0_15 = arith.constant 0 : index
    %c0_16 = arith.constant 0 : index
    %19 = vector.load %arg7[%c0_15, %c0_16] : memref<1x128xf32, #tpu.memory_space<vmem>>, vector<1x128xf32>
    %20 = vector.broadcast %19 : vector<1x128xf32> to vector<16x128xf32>
    %21 = arith.addf %18, %20 : vector<16x128xf32>
    %c0_17 = arith.constant 0 : index
    %c0_18 = arith.constant 0 : index
    %22 = vector.load %arg8[%c0_17, %c0_18] : memref<16x128xf32, #tpu.memory_space<vmem>>, vector<16x128xf32>
    tpu.vector_store %arg8[%c0_17, %c0_18], %21 {strides = array<i32>} : memref<16x128xf32, #tpu.memory_space<vmem>>, vector<16x128xf32>,
    return
  }
  func.func @transform_0(%arg0: i32) -> (i32, i32) {
    %c0_i32 = arith.constant 0 : i32
    %c0_i32_0 = arith.constant 0 : i32
    return %arg0, %c0_i32 : i32, i32
  }
  func.func @transform_1(%arg0: i32) -> (i32, i32) {
    %c0_i32 = arith.constant 0 : i32
    %c0_i32_0 = arith.constant 0 : i32
    %c0_i32_1 = arith.constant 0 : i32
    return %c0_i32, %c0_i32_0 : i32, i32
  }
  func.func @transform_2(%arg0: i32) -> (i32, i32) {
    %c0_i32 = arith.constant 0 : i32
    %c0_i32_0 = arith.constant 0 : i32
    %c0_i32_1 = arith.constant 0 : i32
    return %c0_i32, %c0_i32_0 : i32, i32
  }
  func.func @transform_3(%arg0: i32) -> (i32, i32) {
    %c0_i32 = arith.constant 0 : i32
    %c0_i32_0 = arith.constant 0 : i32
    %c0_i32_1 = arith.constant 0 : i32
    return %c0_i32, %c0_i32_0 : i32, i32
  }
  func.func @transform_4(%arg0: i32) -> (i32, i32) {
    %c0_i32 = arith.constant 0 : i32
    %c0_i32_0 = arith.constant 0 : i32
    %c0_i32_1 = arith.constant 0 : i32
    return %c0_i32, %c0_i32_0 : i32, i32
  }
  func.func @transform_5(%arg0: i32) -> (i32, i32) {
    %c0_i32 = arith.constant 0 : i32
    %c0_i32_0 = arith.constant 0 : i32
    %c0_i32_1 = arith.constant 0 : i32
    return %c0_i32, %c0_i32_0 : i32, i32
  }
  func.func @transform_6(%arg0: i32) -> (i32, i32) {
    %c0_i32 = arith.constant 0 : i32
    %c0_i32_0 = arith.constant 0 : i32
    %c0_i32_1 = arith.constant 0 : i32
    return %c0_i32, %c0_i32_0 : i32, i32
  }
  func.func @transform_7(%arg0: i32) -> (i32, i32) {
    %c0_i32 = arith.constant 0 : i32
    %c0_i32_0 = arith.constant 0 : i32
    return %arg0, %c0_i32 : i32, i32
  }
}

</mosaic_0001>

<llo_original>
// kernel: lenet300_forward.1
$region0: #{lenet300_forward.1}
  #allocation0 [shape = 'u32[]', space=smem, size = 0x4, offset = 0x4, fixed_abs, tag = 'smem constant byte address 0x4 - core index']
  #allocation1 [shape = 'u32[72,128]{1,0:T(1,128)}', space=vmem, size = 0x9000, scoped, tag = 'internal scratch']
  %s0 = inlined_call_operand.vmem [shape: bf16[16,784], index: 0, kind: input, shape index: {}]
  %s1 = inlined_call_operand.hbm [shape: bf16[784,384], index: 1, kind: input, shape index: {}]
  %s2 = inlined_call_operand.hbm [shape: f32[1,384], index: 2, kind: input, shape index: {}]
  %s3 = inlined_call_operand.vmem [shape: bf16[384,128], index: 3, kind: input, shape index: {}]
  %s4 = inlined_call_operand.vmem [shape: f32[1,128], index: 4, kind: input, shape index: {}]
  %s5 = inlined_call_operand.hbm [shape: bf16[128,128], index: 5, kind: input, shape index: {}]
  %s6 = inlined_call_operand.vmem [shape: f32[1,128], index: 6, kind: input, shape index: {}]
  %s7 = inlined_call_operand.vmem [shape: f32[16,128], index: 7, kind: output, shape index: {}]
  %s8 = sld [smem:[#allocation0]]
  $region50: #{lenet300_forward.1} parent=0
    _
  %s10 = ssub.s32 1, %s8
  %s11 = scalar_select 0, %s10, %s8
  $region1: #{lenet300_forward.1} parent=0
    #allocation2 [shape = 'u8[602112]{0}', space=vmem, size = 0x93000, scoped, tag = 'input window, operand 1, single buffered']
    #allocation3 [shape = 's32[1]{0}', space=sflag, size = 0x4, scoped, tag = 'scoped memory for lenet300_forward.1']
    #allocation4 [shape = 'u8[1536]{0}', space=vmem, size = 0x800, scoped, tag = 'input window, operand 2, single buffered']
    #allocation5 [shape = 's32[1]{0}', space=sflag, size = 0x4, scoped, tag = 'scoped memory for lenet300_forward.1']
    #allocation6 [shape = 'u8[32768]{0}', space=vmem, size = 0x8000, scoped, tag = 'input window, operand 5, single buffered']
    %12 = vsyncpa [#allocation3], 0
    %13 = vsyncpa [#allocation5], 0
    // Predicated region
    $region2: #{lenet300_forward.1} parent=1 // pred_check
      _
    $region3: #{lenet300_forward.1} parent=1 // pred_check_branch
      %15 = sbr.rel (0) target = $region5
    $region4: #{lenet300_forward.1} parent=1 // pred_region
      _
    $region5: #{lenet300_forward.1} parent=1 // pred_fallthru
      _
    // Predicated region
    $region6: #{lenet300_forward.1} parent=1 // pred_check
      _
    $region7: #{lenet300_forward.1} parent=1 // pred_check_branch
      %17 = sbr.rel (0) target = $region9
    $region8: #{lenet300_forward.1} parent=1 // pred_region
      %19 = vsyncadd [#allocation3], 0
      %s20 = sshll.u32 %s1, 4
      %s21 = int_to_ptr.hbm [resolvable:$true] %s20
      %s22 = sshll.u32 [#allocation2], 4
      %s23 = int_to_ptr.vmem [resolvable:$true] %s22
      %28 = dma.hbm_to_vmem [thread:$0]  %s21, 18816, %s23, [#allocation3], 192, 192, 12
    $region9: #{lenet300_forward.1} parent=1 // pred_fallthru
      _
    // Predicated region
    $region10: #{lenet300_forward.1} parent=1 // pred_check
      _
    $region11: #{lenet300_forward.1} parent=1 // pred_check_branch
      %30 = sbr.rel (0) target = $region13
    $region12: #{lenet300_forward.1} parent=1 // pred_region
      %32 = vsyncadd [#allocation5], 0
      %s34 = sshll.u32 %s2, 4
      %s35 = int_to_ptr.hbm [resolvable:$true] %s34
      %s36 = sshll.u32 [#allocation4], 4
      %s37 = int_to_ptr.vmem [resolvable:$true] %s36
      %39 = dma.hbm_to_vmem [thread:$0]  %s35, 48, %s37, [#allocation5]
    $region13: #{lenet300_forward.1} parent=1 // pred_fallthru
      _
    // Predicated region
    $region14: #{lenet300_forward.1} parent=1 // pred_check
      _
    $region15: #{lenet300_forward.1} parent=1 // pred_check_branch
      %41 = sbr.rel (0) target = $region17
    $region16: #{lenet300_forward.1} parent=1 // pred_region
      _
    $region17: #{lenet300_forward.1} parent=1 // pred_fallthru
      _
    // Predicated region
    $region18: #{lenet300_forward.1} parent=1 // pred_check
      _
    $region19: #{lenet300_forward.1} parent=1 // pred_check_branch
      %43 = sbr.rel (0) target = $region21
    $region20: #{lenet300_forward.1} parent=1 // pred_region
      _
    $region21: #{lenet300_forward.1} parent=1 // pred_fallthru
      _
    // Predicated region
    $region22: #{lenet300_forward.1} parent=1 // pred_check
      _
    $region23: #{lenet300_forward.1} parent=1 // pred_check_branch
      %45 = sbr.rel (0) target = $region25
    $region24: #{lenet300_forward.1} parent=1 // pred_region
      %47 = vsyncadd [#allocation5], 0
      %s48 = sshll.u32 %s5, 4
      %s49 = int_to_ptr.hbm [resolvable:$true] %s48
      %s50 = sshll.u32 [#allocation6], 4
      %s51 = int_to_ptr.vmem [resolvable:$true] %s50
      %56 = dma.hbm_to_vmem [thread:$0]  %s49, 1024, %s51, [#allocation5], 64, 64, 4
    $region25: #{lenet300_forward.1} parent=1 // pred_fallthru
      _
    // Predicated region
    $region26: #{lenet300_forward.1} parent=1 // pred_check
      _
    $region27: #{lenet300_forward.1} parent=1 // pred_check_branch
      %58 = sbr.rel (0) target = $region29
    $region28: #{lenet300_forward.1} parent=1 // pred_region
      _
    $region29: #{lenet300_forward.1} parent=1 // pred_fallthru
      _
    // Predicated region
    $region30: #{lenet300_forward.1} parent=1 // pred_check
      _
    $region31: #{lenet300_forward.1} parent=1 // pred_check_branch
      %60 = sbr.rel (0) target = $region33
    $region32: #{lenet300_forward.1} parent=1 // pred_region
      %62 = dma.done [#allocation3], 18816
    $region33: #{lenet300_forward.1} parent=1 // pred_fallthru
      _
    // Predicated region
    $region34: #{lenet300_forward.1} parent=1 // pred_check
      _
    $region35: #{lenet300_forward.1} parent=1 // pred_check_branch
      %64 = sbr.rel (0) target = $region37
    $region36: #{lenet300_forward.1} parent=1 // pred_region
      %66 = dma.done [#allocation5], 48
    $region37: #{lenet300_forward.1} parent=1 // pred_fallthru
      _
    // Predicated region
    $region38: #{lenet300_forward.1} parent=1 // pred_check
      _
    $region39: #{lenet300_forward.1} parent=1 // pred_check_branch
      %68 = sbr.rel (0) target = $region41
    $region40: #{lenet300_forward.1} parent=1 // pred_region
      %70 = dma.done [#allocation5], 1024
    $region41: #{lenet300_forward.1} parent=1 // pred_fallthru
      _
    %v72 = vld [vmem:[%s0] sm:$0xff]
    %v73 = vld [vmem:[%s0 + $0x8] sm:$0xff]
    %v74 = vld [vmem:[%s0 + $0x10] sm:$0xff]
    %v75 = vld [vmem:[%s0 + $0x18] sm:$0xf]
    %v76 = vld [vmem:[%s0 + $0x1c] sm:$0xff]
    %v77 = vld [vmem:[%s0 + $0x24] sm:$0xff]
    %v78 = vld [vmem:[%s0 + $0x2c] sm:$0xff]
    %v79 = vld [vmem:[%s0 + $0x34] sm:$0xf]
    %v80 = vld [vmem:[#allocation2] sm:$0xff]
    %v81 = vld [vmem:[#allocation2 + $0x8] sm:$0xf]
    %v82 = vld [vmem:[#allocation2 + $0xc] sm:$0xff]
    %v83 = vld [vmem:[#allocation2 + $0x14] sm:$0xf]
    %v84 = vld [vmem:[#allocation2 + $0x18] sm:$0xff]
    %v85 = vld [vmem:[#allocation2 + $0x20] sm:$0xf]
    %v86 = vld [vmem:[#allocation2 + $0x24] sm:$0xff]
    %v87 = vld [vmem:[#allocation2 + $0x2c] sm:$0xf]
    %v88 = vld [vmem:[#allocation2 + $0x30] sm:$0xff]
    %v89 = vld [vmem:[#allocation2 + $0x38] sm:$0xf]
    %v90 = vld [vmem:[#allocation2 + $0x3c] sm:$0xff]
    %v91 = vld [vmem:[#allocation2 + $0x44] sm:$0xf]
    %v92 = vld [vmem:[#allocation2 + $0x48] sm:$0xff]
    %v93 = vld [vmem:[#allocation2 + $0x50] sm:$0xf]
    %v94 = vld [vmem:[#allocation2 + $0x54] sm:$0xff]
    %v95 = vld [vmem:[#allocation2 + $0x5c] sm:$0xf]
    %v96 = vld [vmem:[#allocation2 + $0x60] sm:$0xff]
    %v97 = vld [vmem:[#allocation2 + $0x68] sm:$0xf]
    %v98 = vld [vmem:[#allocation2 + $0x6c] sm:$0xff]
    %v99 = vld [vmem:[#allocation2 + $0x74] sm:$0xf]
    %v100 = vld [vmem:[#allocation2 + $0x78] sm:$0xff]
    %v101 = vld [vmem:[#allocation2 + $0x80] sm:$0xf]
    %v102 = vld [vmem:[#allocation2 + $0x84] sm:$0xff]
    %v103 = vld [vmem:[#allocation2 + $0x8c] sm:$0xf]
    %v104 = vld [vmem:[#allocation2 + $0x90] sm:$0xff]
    %v105 = vld [vmem:[#allocation2 + $0x98] sm:$0xf]
    %v106 = vld [vmem:[#allocation2 + $0x9c] sm:$0xff]
    %v107 = vld [vmem:[#allocation2 + $0xa4] sm:$0xf]
    %v108 = vld [vmem:[#allocation2 + $0xa8] sm:$0xff]
    %v109 = vld [vmem:[#allocation2 + $0xb0] sm:$0xf]
    %v110 = vld [vmem:[#allocation2 + $0xb4] sm:$0xff]
    %v111 = vld [vmem:[#allocation2 + $0xbc] sm:$0xf]
    %v112 = vld [vmem:[#allocation2 + $0xc0] sm:$0xff]
    %v113 = vld [vmem:[#allocation2 + $0xc8] sm:$0xf]
    %v114 = vld [vmem:[#allocation2 + $0xcc] sm:$0xff]
    %v115 = vld [vmem:[#allocation2 + $0xd4] sm:$0xf]
    %v116 = vld [vmem:[#allocation2 + $0xd8] sm:$0xff]
    %v117 = vld [vmem:[#allocation2 + $0xe0] sm:$0xf]
    %v118 = vld [vmem:[#allocation2 + $0xe4] sm:$0xff]
    %v119 = vld [vmem:[#allocation2 + $0xec] sm:$0xf]
    %v120 = vld [vmem:[#allocation2 + $0xf0] sm:$0xff]
    %v121 = vld [vmem:[#allocation2 + $0xf8] sm:$0xf]
    %v122 = vld [vmem:[#allocation2 + $0xfc] sm:$0xff]
    %v123 = vld [vmem:[#allocation2 + $0x104] sm:$0xf]
    %v124 = vld [vmem:[#allocation2 + $0x108] sm:$0xff]
    %v125 = vld [vmem:[#allocation2 + $0x110] sm:$0xf]
    %v126 = vld [vmem:[#allocation2 + $0x114] sm:$0xff]
    %v127 = vld [vmem:[#allocation2 + $0x11c] sm:$0xf]
    %v128 = vld [vmem:[#allocation2 + $0x120] sm:$0xff]
    %v129 = vld [vmem:[#allocation2 + $0x128] sm:$0xf]
    %v130 = vld [vmem:[#allocation2 + $0x12c] sm:$0xff]
    %v131 = vld [vmem:[#allocation2 + $0x134] sm:$0xf]
    %v132 = vld [vmem:[#allocation2 + $0x138] sm:$0xff]
    %v133 = vld [vmem:[#allocation2 + $0x140] sm:$0xf]
    %v134 = vld [vmem:[#allocation2 + $0x144] sm:$0xff]
    %v135 = vld [vmem:[#allocation2 + $0x14c] sm:$0xf]
    %v136 = vld [vmem:[#allocation2 + $0x150] sm:$0xff]
    %v137 = vld [vmem:[#allocation2 + $0x158] sm:$0xf]
    %v138 = vld [vmem:[#allocation2 + $0x15c] sm:$0xff]
    %v139 = vld [vmem:[#allocation2 + $0x164] sm:$0xf]
    %v140 = vld [vmem:[#allocation2 + $0x168] sm:$0xff]
    %v141 = vld [vmem:[#allocation2 + $0x170] sm:$0xf]
    %v142 = vld [vmem:[#allocation2 + $0x174] sm:$0xff]
    %v143 = vld [vmem:[#allocation2 + $0x17c] sm:$0xf]
    %v144 = vld [vmem:[#allocation2 + $0x180] sm:$0xff]
    %v145 = vld [vmem:[#allocation2 + $0x188] sm:$0xf]
    %v146 = vld [vmem:[#allocation2 + $0x18c] sm:$0xff]
    %v147 = vld [vmem:[#allocation2 + $0x194] sm:$0xf]
    %v148 = vld [vmem:[#allocation2 + $0x198] sm:$0xff]
    %v149 = vld [vmem:[#allocation2 + $0x1a0] sm:$0xf]
    %v150 = vld [vmem:[#allocation2 + $0x1a4] sm:$0xff]
    %v151 = vld [vmem:[#allocation2 + $0x1ac] sm:$0xf]
    %v152 = vld [vmem:[#allocation2 + $0x1b0] sm:$0xff]
    %v153 = vld [vmem:[#allocation2 + $0x1b8] sm:$0xf]
    %v154 = vld [vmem:[#allocation2 + $0x1bc] sm:$0xff]
    %v155 = vld [vmem:[#allocation2 + $0x1c4] sm:$0xf]
    %v156 = vld [vmem:[#allocation2 + $0x1c8] sm:$0xff]
    %v157 = vld [vmem:[#allocation2 + $0x1d0] sm:$0xf]
    %v158 = vld [vmem:[#allocation2 + $0x1d4] sm:$0xff]
    %v159 = vld [vmem:[#allocation2 + $0x1dc] sm:$0xf]
    %v160 = vld [vmem:[#allocation2 + $0x1e0] sm:$0xff]
    %v161 = vld [vmem:[#allocation2 + $0x1e8] sm:$0xf]
    %v162 = vld [vmem:[#allocation2 + $0x1ec] sm:$0xff]
    %v163 = vld [vmem:[#allocation2 + $0x1f4] sm:$0xf]
    %v164 = vld [vmem:[#allocation2 + $0x1f8] sm:$0xff]
    %v165 = vld [vmem:[#allocation2 + $0x200] sm:$0xf]
    %v166 = vld [vmem:[#allocation2 + $0x204] sm:$0xff]
    %v167 = vld [vmem:[#allocation2 + $0x20c] sm:$0xf]
    %v168 = vld [vmem:[#allocation2 + $0x210] sm:$0xff]
    %v169 = vld [vmem:[#allocation2 + $0x218] sm:$0xf]
    %v170 = vld [vmem:[#allocation2 + $0x21c] sm:$0xff]
    %v171 = vld [vmem:[#allocation2 + $0x224] sm:$0xf]
    %v172 = vld [vmem:[#allocation2 + $0x228] sm:$0xff]
    %v173 = vld [vmem:[#allocation2 + $0x230] sm:$0xf]
    %v174 = vld [vmem:[#allocation2 + $0x234] sm:$0xff]
    %v175 = vld [vmem:[#allocation2 + $0x23c] sm:$0xf]
    %v176 = vld [vmem:[#allocation2 + $0x240] sm:$0xff]
    %v177 = vld [vmem:[#allocation2 + $0x248] sm:$0xf]
    %v178 = vld [vmem:[#allocation2 + $0x24c] sm:$0xff]
    %v179 = vld [vmem:[#allocation2 + $0x254] sm:$0xf]
    %v180 = vld [vmem:[#allocation2 + $0x258] sm:$0xff]
    %v181 = vld [vmem:[#allocation2 + $0x260] sm:$0xf]
    %v182 = vld [vmem:[#allocation2 + $0x264] sm:$0xff]
    %v183 = vld [vmem:[#allocation2 + $0x26c] sm:$0xf]
    %v184 = vld [vmem:[#allocation2 + $0x270] sm:$0xff]
    %v185 = vld [vmem:[#allocation2 + $0x278] sm:$0xf]
    %v186 = vld [vmem:[#allocation2 + $0x27c] sm:$0xff]
    %v187 = vld [vmem:[#allocation2 + $0x284] sm:$0xf]
    %v188 = vld [vmem:[#allocation2 + $0x288] sm:$0xff]
    %v189 = vld [vmem:[#allocation2 + $0x290] sm:$0xf]
    %v190 = vld [vmem:[#allocation2 + $0x294] sm:$0xff]
    %v191 = vld [vmem:[#allocation2 + $0x29c] sm:$0xf]
    %v192 = vld [vmem:[#allocation2 + $0x2a0] sm:$0xff]
    %v193 = vld [vmem:[#allocation2 + $0x2a8] sm:$0xf]
    %v194 = vld [vmem:[#allocation2 + $0x2ac] sm:$0xff]
    %v195 = vld [vmem:[#allocation2 + $0x2b4] sm:$0xf]
    %v196 = vld [vmem:[#allocation2 + $0x2b8] sm:$0xff]
    %v197 = vld [vmem:[#allocation2 + $0x2c0] sm:$0xf]
    %v198 = vld [vmem:[#allocation2 + $0x2c4] sm:$0xff]
    %v199 = vld [vmem:[#allocation2 + $0x2cc] sm:$0xf]
    %v200 = vld [vmem:[#allocation2 + $0x2d0] sm:$0xff]
    %v201 = vld [vmem:[#allocation2 + $0x2d8] sm:$0xf]
    %v202 = vld [vmem:[#allocation2 + $0x2dc] sm:$0xff]
    %v203 = vld [vmem:[#allocation2 + $0x2e4] sm:$0xf]
    %v204 = vld [vmem:[#allocation2 + $0x2e8] sm:$0xff]
    %v205 = vld [vmem:[#allocation2 + $0x2f0] sm:$0xf]
    %v206 = vld [vmem:[#allocation2 + $0x2f4] sm:$0xff]
    %v207 = vld [vmem:[#allocation2 + $0x2fc] sm:$0xf]
    %v208 = vld [vmem:[#allocation2 + $0x300] sm:$0xff]
    %v209 = vld [vmem:[#allocation2 + $0x308] sm:$0xf]
    %v210 = vld [vmem:[#allocation2 + $0x30c] sm:$0xff]
    %v211 = vld [vmem:[#allocation2 + $0x314] sm:$0xf]
    %v212 = vld [vmem:[#allocation2 + $0x318] sm:$0xff]
    %v213 = vld [vmem:[#allocation2 + $0x320] sm:$0xf]
    %v214 = vld [vmem:[#allocation2 + $0x324] sm:$0xff]
    %v215 = vld [vmem:[#allocation2 + $0x32c] sm:$0xf]
    %v216 = vld [vmem:[#allocation2 + $0x330] sm:$0xff]
    %v217 = vld [vmem:[#allocation2 + $0x338] sm:$0xf]
    %v218 = vld [vmem:[#allocation2 + $0x33c] sm:$0xff]
    %v219 = vld [vmem:[#allocation2 + $0x344] sm:$0xf]
    %v220 = vld [vmem:[#allocation2 + $0x348] sm:$0xff]
    %v221 = vld [vmem:[#allocation2 + $0x350] sm:$0xf]
    %v222 = vld [vmem:[#allocation2 + $0x354] sm:$0xff]
    %v223 = vld [vmem:[#allocation2 + $0x35c] sm:$0xf]
    %v224 = vld [vmem:[#allocation2 + $0x360] sm:$0xff]
    %v225 = vld [vmem:[#allocation2 + $0x368] sm:$0xf]
    %v226 = vld [vmem:[#allocation2 + $0x36c] sm:$0xff]
    %v227 = vld [vmem:[#allocation2 + $0x374] sm:$0xf]
    %v228 = vld [vmem:[#allocation2 + $0x378] sm:$0xff]
    %v229 = vld [vmem:[#allocation2 + $0x380] sm:$0xf]
    %v230 = vld [vmem:[#allocation2 + $0x384] sm:$0xff]
    %v231 = vld [vmem:[#allocation2 + $0x38c] sm:$0xf]
    %v232 = vld [vmem:[#allocation2 + $0x390] sm:$0xff]
    %v233 = vld [vmem:[#allocation2 + $0x398] sm:$0xf]
    %v234 = vld [vmem:[#allocation2 + $0x39c] sm:$0xff]
    %v235 = vld [vmem:[#allocation2 + $0x3a4] sm:$0xf]
    %v236 = vld [vmem:[#allocation2 + $0x3a8] sm:$0xff]
    %v237 = vld [vmem:[#allocation2 + $0x3b0] sm:$0xf]
    %v238 = vld [vmem:[#allocation2 + $0x3b4] sm:$0xff]
    %v239 = vld [vmem:[#allocation2 + $0x3bc] sm:$0xf]
    %v240 = vld [vmem:[#allocation2 + $0x3c0] sm:$0xff]
    %v241 = vld [vmem:[#allocation2 + $0x3c8] sm:$0xf]
    %v242 = vld [vmem:[#allocation2 + $0x3cc] sm:$0xff]
    %v243 = vld [vmem:[#allocation2 + $0x3d4] sm:$0xf]
    %v244 = vld [vmem:[#allocation2 + $0x3d8] sm:$0xff]
    %v245 = vld [vmem:[#allocation2 + $0x3e0] sm:$0xf]
    %v246 = vld [vmem:[#allocation2 + $0x3e4] sm:$0xff]
    %v247 = vld [vmem:[#allocation2 + $0x3ec] sm:$0xf]
    %v248 = vld [vmem:[#allocation2 + $0x3f0] sm:$0xff]
    %v249 = vld [vmem:[#allocation2 + $0x3f8] sm:$0xf]
    %v250 = vld [vmem:[#allocation2 + $0x3fc] sm:$0xff]
    %v251 = vld [vmem:[#allocation2 + $0x404] sm:$0xf]
    %v252 = vld [vmem:[#allocation2 + $0x408] sm:$0xff]
    %v253 = vld [vmem:[#allocation2 + $0x410] sm:$0xf]
    %v254 = vld [vmem:[#allocation2 + $0x414] sm:$0xff]
    %v255 = vld [vmem:[#allocation2 + $0x41c] sm:$0xf]
    %v256 = vld [vmem:[#allocation2 + $0x420] sm:$0xff]
    %v257 = vld [vmem:[#allocation2 + $0x428] sm:$0xf]
    %v258 = vld [vmem:[#allocation2 + $0x42c] sm:$0xff]
    %v259 = vld [vmem:[#allocation2 + $0x434] sm:$0xf]
    %v260 = vld [vmem:[#allocation2 + $0x438] sm:$0xff]
    %v261 = vld [vmem:[#allocation2 + $0x440] sm:$0xf]
    %v262 = vld [vmem:[#allocation2 + $0x444] sm:$0xff]
    %v263 = vld [vmem:[#allocation2 + $0x44c] sm:$0xf]
    %v264 = vld [vmem:[#allocation2 + $0x450] sm:$0xff]
    %v265 = vld [vmem:[#allocation2 + $0x458] sm:$0xf]
    %v266 = vld [vmem:[#allocation2 + $0x45c] sm:$0xff]
    %v267 = vld [vmem:[#allocation2 + $0x464] sm:$0xf]
    %v268 = vld [vmem:[#allocation2 + $0x468] sm:$0xff]
    %v269 = vld [vmem:[#allocation2 + $0x470] sm:$0xf]
    %v270 = vld [vmem:[#allocation2 + $0x474] sm:$0xff]
    %v271 = vld [vmem:[#allocation2 + $0x47c] sm:$0xf]
    %v272 = vld [vmem:[#allocation2 + $0x480] sm:$0xff]
    %v273 = vld [vmem:[#allocation2 + $0x488] sm:$0xf]
    %v274 = vld [vmem:[#allocation2 + $0x48c] sm:$0xff]
    %v275 = vld [vmem:[#allocation2 + $0x494] sm:$0xf]
    %v276 = vld [vmem:[#allocation4] sm:$0x7]
    %v278 = vperm.slane %v276, 0
    %v279 = vperm.slane %v276, 1
    %v280 = vperm.slane %v276, 2
    %v292 = vunpack.c.l.b16 %v72
    %v293 = vunpack.c.h.b16 %v72
    %v294 = vunpack.c.l.b16 %v73
    %v295 = vunpack.c.h.b16 %v73
    %v296 = vunpack.c.l.b16 %v74
    %v297 = vunpack.c.h.b16 %v74
    %v298 = vunpack.c.l.b16 %v75
    %v299 = vunpack.c.l.b16 %v76
    %v300 = vunpack.c.h.b16 %v76
    %v301 = vunpack.c.l.b16 %v77
    %v302 = vunpack.c.h.b16 %v77
    %v303 = vunpack.c.l.b16 %v78
    %v304 = vunpack.c.h.b16 %v78
    %v305 = vunpack.c.l.b16 %v79
    %v306 = vpack.c.b16 %v299, %v292
    %v307 = vpack.c.b16 %v300, %v293
    %v308 = vpack.c.b16 %v301, %v294
    %v309 = vpack.c.b16 %v302, %v295
    %v310 = vpack.c.b16 %v303, %v296
    %v311 = vpack.c.b16 %v304, %v297
    %v312 = vpack.c.b16 %v305, %v298
    %v515 = vunpack.c.l.b16 %v80
    %v516 = vunpack.c.h.b16 %v80
    %v517 = vunpack.c.l.b16 %v81
    %v518 = vunpack.c.l.b16 %v82
    %v519 = vunpack.c.h.b16 %v82
    %v520 = vunpack.c.l.b16 %v83
    %v521 = vunpack.c.l.b16 %v84
    %v522 = vunpack.c.h.b16 %v84
    %v523 = vunpack.c.l.b16 %v85
    %v524 = vunpack.c.l.b16 %v86
    %v525 = vunpack.c.h.b16 %v86
    %v526 = vunpack.c.l.b16 %v87
    %v527 = vunpack.c.l.b16 %v88
    %v528 = vunpack.c.h.b16 %v88
    %v529 = vunpack.c.l.b16 %v89
    %v530 = vunpack.c.l.b16 %v90
    %v531 = vunpack.c.h.b16 %v90
    %v532 = vunpack.c.l.b16 %v91
    %v533 = vunpack.c.l.b16 %v92
    %v534 = vunpack.c.h.b16 %v92
    %v535 = vunpack.c.l.b16 %v93
    %v536 = vunpack.c.l.b16 %v94
    %v537 = vunpack.c.h.b16 %v94
    %v538 = vunpack.c.l.b16 %v95
    %v539 = vunpack.c.l.b16 %v96
    %v540 = vunpack.c.h.b16 %v96
    %v541 = vunpack.c.l.b16 %v97
    %v542 = vunpack.c.l.b16 %v98
    %v543 = vunpack.c.h.b16 %v98
    %v544 = vunpack.c.l.b16 %v99
    %v545 = vunpack.c.l.b16 %v100
    %v546 = vunpack.c.h.b16 %v100
    %v547 = vunpack.c.l.b16 %v101
    %v548 = vunpack.c.l.b16 %v102
    %v549 = vunpack.c.h.b16 %v102
    %v550 = vunpack.c.l.b16 %v103
    %v551 = vunpack.c.l.b16 %v104
    %v552 = vunpack.c.h.b16 %v104
    %v553 = vunpack.c.l.b16 %v105
    %v554 = vunpack.c.l.b16 %v106
    %v555 = vunpack.c.h.b16 %v106
    %v556 = vunpack.c.l.b16 %v107
    %v557 = vunpack.c.l.b16 %v108
    %v558 = vunpack.c.h.b16 %v108
    %v559 = vunpack.c.l.b16 %v109
    %v560 = vunpack.c.l.b16 %v110
    %v561 = vunpack.c.h.b16 %v110
    %v562 = vunpack.c.l.b16 %v111
    %v563 = vunpack.c.l.b16 %v112
    %v564 = vunpack.c.h.b16 %v112
    %v565 = vunpack.c.l.b16 %v113
    %v566 = vunpack.c.l.b16 %v114
    %v567 = vunpack.c.h.b16 %v114
    %v568 = vunpack.c.l.b16 %v115
    %v569 = vunpack.c.l.b16 %v116
    %v570 = vunpack.c.h.b16 %v116
    %v571 = vunpack.c.l.b16 %v117
    %v572 = vunpack.c.l.b16 %v118
    %v573 = vunpack.c.h.b16 %v118
    %v574 = vunpack.c.l.b16 %v119
    %v575 = vunpack.c.l.b16 %v120
    %v576 = vunpack.c.h.b16 %v120
    %v577 = vunpack.c.l.b16 %v121
    %v578 = vunpack.c.l.b16 %v122
    %v579 = vunpack.c.h.b16 %v122
    %v580 = vunpack.c.l.b16 %v123
    %v581 = vunpack.c.l.b16 %v124
    %v582 = vunpack.c.h.b16 %v124
    %v583 = vunpack.c.l.b16 %v125
    %v584 = vunpack.c.l.b16 %v126
    %v585 = vunpack.c.h.b16 %v126
    %v586 = vunpack.c.l.b16 %v127
    %v587 = vunpack.c.l.b16 %v128
    %v588 = vunpack.c.h.b16 %v128
    %v589 = vunpack.c.l.b16 %v129
    %v590 = vunpack.c.l.b16 %v130
    %v591 = vunpack.c.h.b16 %v130
    %v592 = vunpack.c.l.b16 %v131
    %v593 = vunpack.c.l.b16 %v132
    %v594 = vunpack.c.h.b16 %v132
    %v595 = vunpack.c.l.b16 %v133
    %v596 = vunpack.c.l.b16 %v134
    %v597 = vunpack.c.h.b16 %v134
    %v598 = vunpack.c.l.b16 %v135
    %v599 = vunpack.c.l.b16 %v136
    %v600 = vunpack.c.h.b16 %v136
    %v601 = vunpack.c.l.b16 %v137
    %v602 = vunpack.c.l.b16 %v138
    %v603 = vunpack.c.h.b16 %v138
    %v604 = vunpack.c.l.b16 %v139
    %v605 = vunpack.c.l.b16 %v140
    %v606 = vunpack.c.h.b16 %v140
    %v607 = vunpack.c.l.b16 %v141
    %v608 = vunpack.c.l.b16 %v142
    %v609 = vunpack.c.h.b16 %v142
    %v610 = vunpack.c.l.b16 %v143
    %v611 = vunpack.c.l.b16 %v144
    %v612 = vunpack.c.h.b16 %v144
    %v613 = vunpack.c.l.b16 %v145
    %v614 = vunpack.c.l.b16 %v146
    %v615 = vunpack.c.h.b16 %v146
    %v616 = vunpack.c.l.b16 %v147
    %v617 = vunpack.c.l.b16 %v148
    %v618 = vunpack.c.h.b16 %v148
    %v619 = vunpack.c.l.b16 %v149
    %v620 = vunpack.c.l.b16 %v150
    %v621 = vunpack.c.h.b16 %v150
    %v622 = vunpack.c.l.b16 %v151
    %v623 = vunpack.c.l.b16 %v152
    %v624 = vunpack.c.h.b16 %v152
    %v625 = vunpack.c.l.b16 %v153
    %v626 = vunpack.c.l.b16 %v154
    %v627 = vunpack.c.h.b16 %v154
    %v628 = vunpack.c.l.b16 %v155
    %v629 = vunpack.c.l.b16 %v156
    %v630 = vunpack.c.h.b16 %v156
    %v631 = vunpack.c.l.b16 %v157
    %v632 = vunpack.c.l.b16 %v158
    %v633 = vunpack.c.h.b16 %v158
    %v634 = vunpack.c.l.b16 %v159
    %v635 = vunpack.c.l.b16 %v160
    %v636 = vunpack.c.h.b16 %v160
    %v637 = vunpack.c.l.b16 %v161
    %v638 = vunpack.c.l.b16 %v162
    %v639 = vunpack.c.h.b16 %v162
    %v640 = vunpack.c.l.b16 %v163
    %v641 = vunpack.c.l.b16 %v164
    %v642 = vunpack.c.h.b16 %v164
    %v643 = vunpack.c.l.b16 %v165
    %v644 = vunpack.c.l.b16 %v166
    %v645 = vunpack.c.h.b16 %v166
    %v646 = vunpack.c.l.b16 %v167
    %v647 = vunpack.c.l.b16 %v168
    %v648 = vunpack.c.h.b16 %v168
    %v649 = vunpack.c.l.b16 %v169
    %v650 = vunpack.c.l.b16 %v170
    %v651 = vunpack.c.h.b16 %v170
    %v652 = vunpack.c.l.b16 %v171
    %v653 = vunpack.c.l.b16 %v172
    %v654 = vunpack.c.h.b16 %v172
    %v655 = vunpack.c.l.b16 %v173
    %v656 = vunpack.c.l.b16 %v174
    %v657 = vunpack.c.h.b16 %v174
    %v658 = vunpack.c.l.b16 %v175
    %v659 = vunpack.c.l.b16 %v176
    %v660 = vunpack.c.h.b16 %v176
    %v661 = vunpack.c.l.b16 %v177
    %v662 = vunpack.c.l.b16 %v178
    %v663 = vunpack.c.h.b16 %v178
    %v664 = vunpack.c.l.b16 %v179
    %v665 = vunpack.c.l.b16 %v180
    %v666 = vunpack.c.h.b16 %v180
    %v667 = vunpack.c.l.b16 %v181
    %v668 = vunpack.c.l.b16 %v182
    %v669 = vunpack.c.h.b16 %v182
    %v670 = vunpack.c.l.b16 %v183
    %v671 = vunpack.c.l.b16 %v184
    %v672 = vunpack.c.h.b16 %v184
    %v673 = vunpack.c.l.b16 %v185
    %v674 = vunpack.c.l.b16 %v186
    %v675 = vunpack.c.h.b16 %v186
    %v676 = vunpack.c.l.b16 %v187
    %v677 = vunpack.c.l.b16 %v188
    %v678 = vunpack.c.h.b16 %v188
    %v679 = vunpack.c.l.b16 %v189
    %v680 = vunpack.c.l.b16 %v190
    %v681 = vunpack.c.h.b16 %v190
    %v682 = vunpack.c.l.b16 %v191
    %v683 = vunpack.c.l.b16 %v192
    %v684 = vunpack.c.h.b16 %v192
    %v685 = vunpack.c.l.b16 %v193
    %v686 = vunpack.c.l.b16 %v194
    %v687 = vunpack.c.h.b16 %v194
    %v688 = vunpack.c.l.b16 %v195
    %v689 = vunpack.c.l.b16 %v196
    %v690 = vunpack.c.h.b16 %v196
    %v691 = vunpack.c.l.b16 %v197
    %v692 = vunpack.c.l.b16 %v198
    %v693 = vunpack.c.h.b16 %v198
    %v694 = vunpack.c.l.b16 %v199
    %v695 = vunpack.c.l.b16 %v200
    %v696 = vunpack.c.h.b16 %v200
    %v697 = vunpack.c.l.b16 %v201
    %v698 = vunpack.c.l.b16 %v202
    %v699 = vunpack.c.h.b16 %v202
    %v700 = vunpack.c.l.b16 %v203
    %v701 = vunpack.c.l.b16 %v204
    %v702 = vunpack.c.h.b16 %v204
    %v703 = vunpack.c.l.b16 %v205
    %v704 = vunpack.c.l.b16 %v206
    %v705 = vunpack.c.h.b16 %v206
    %v706 = vunpack.c.l.b16 %v207
    %v707 = vunpack.c.l.b16 %v208
    %v708 = vunpack.c.h.b16 %v208
    %v709 = vunpack.c.l.b16 %v209
    %v710 = vunpack.c.l.b16 %v210
    %v711 = vunpack.c.h.b16 %v210
    %v712 = vunpack.c.l.b16 %v211
    %v713 = vunpack.c.l.b16 %v212
    %v714 = vunpack.c.h.b16 %v212
    %v715 = vunpack.c.l.b16 %v213
    %v716 = vunpack.c.l.b16 %v214
    %v717 = vunpack.c.h.b16 %v214
    %v718 = vunpack.c.l.b16 %v215
    %v719 = vunpack.c.l.b16 %v216
    %v720 = vunpack.c.h.b16 %v216
    %v721 = vunpack.c.l.b16 %v217
    %v722 = vunpack.c.l.b16 %v218
    %v723 = vunpack.c.h.b16 %v218
    %v724 = vunpack.c.l.b16 %v219
    %v725 = vunpack.c.l.b16 %v220
    %v726 = vunpack.c.h.b16 %v220
    %v727 = vunpack.c.l.b16 %v221
    %v728 = vunpack.c.l.b16 %v222
    %v729 = vunpack.c.h.b16 %v222
    %v730 = vunpack.c.l.b16 %v223
    %v731 = vunpack.c.l.b16 %v224
    %v732 = vunpack.c.h.b16 %v224
    %v733 = vunpack.c.l.b16 %v225
    %v734 = vunpack.c.l.b16 %v226
    %v735 = vunpack.c.h.b16 %v226
    %v736 = vunpack.c.l.b16 %v227
    %v737 = vunpack.c.l.b16 %v228
    %v738 = vunpack.c.h.b16 %v228
    %v739 = vunpack.c.l.b16 %v229
    %v740 = vunpack.c.l.b16 %v230
    %v741 = vunpack.c.h.b16 %v230
    %v742 = vunpack.c.l.b16 %v231
    %v743 = vunpack.c.l.b16 %v232
    %v744 = vunpack.c.h.b16 %v232
    %v745 = vunpack.c.l.b16 %v233
    %v746 = vunpack.c.l.b16 %v234
    %v747 = vunpack.c.h.b16 %v234
    %v748 = vunpack.c.l.b16 %v235
    %v749 = vunpack.c.l.b16 %v236
    %v750 = vunpack.c.h.b16 %v236
    %v751 = vunpack.c.l.b16 %v237
    %v752 = vunpack.c.l.b16 %v238
    %v753 = vunpack.c.h.b16 %v238
    %v754 = vunpack.c.l.b16 %v239
    %v755 = vunpack.c.l.b16 %v240
    %v756 = vunpack.c.h.b16 %v240
    %v757 = vunpack.c.l.b16 %v241
    %v758 = vunpack.c.l.b16 %v242
    %v759 = vunpack.c.h.b16 %v242
    %v760 = vunpack.c.l.b16 %v243
    %v761 = vunpack.c.l.b16 %v244
    %v762 = vunpack.c.h.b16 %v244
    %v763 = vunpack.c.l.b16 %v245
    %v764 = vunpack.c.l.b16 %v246
    %v765 = vunpack.c.h.b16 %v246
    %v766 = vunpack.c.l.b16 %v247
    %v767 = vunpack.c.l.b16 %v248
    %v768 = vunpack.c.h.b16 %v248
    %v769 = vunpack.c.l.b16 %v249
    %v770 = vunpack.c.l.b16 %v250
    %v771 = vunpack.c.h.b16 %v250
    %v772 = vunpack.c.l.b16 %v251
    %v773 = vunpack.c.l.b16 %v252
    %v774 = vunpack.c.h.b16 %v252
    %v775 = vunpack.c.l.b16 %v253
    %v776 = vunpack.c.l.b16 %v254
    %v777 = vunpack.c.h.b16 %v254
    %v778 = vunpack.c.l.b16 %v255
    %v779 = vunpack.c.l.b16 %v256
    %v780 = vunpack.c.h.b16 %v256
    %v781 = vunpack.c.l.b16 %v257
    %v782 = vunpack.c.l.b16 %v258
    %v783 = vunpack.c.h.b16 %v258
    %v784 = vunpack.c.l.b16 %v259
    %v785 = vunpack.c.l.b16 %v260
    %v786 = vunpack.c.h.b16 %v260
    %v787 = vunpack.c.l.b16 %v261
    %v788 = vunpack.c.l.b16 %v262
    %v789 = vunpack.c.h.b16 %v262
    %v790 = vunpack.c.l.b16 %v263
    %v791 = vunpack.c.l.b16 %v264
    %v792 = vunpack.c.h.b16 %v264
    %v793 = vunpack.c.l.b16 %v265
    %v794 = vunpack.c.l.b16 %v266
    %v795 = vunpack.c.h.b16 %v266
    %v796 = vunpack.c.l.b16 %v267
    %v797 = vunpack.c.l.b16 %v268
    %v798 = vunpack.c.h.b16 %v268
    %v799 = vunpack.c.l.b16 %v269
    %v800 = vunpack.c.l.b16 %v270
    %v801 = vunpack.c.h.b16 %v270
    %v802 = vunpack.c.l.b16 %v271
    %v803 = vunpack.c.l.b16 %v272
    %v804 = vunpack.c.h.b16 %v272
    %v805 = vunpack.c.l.b16 %v273
    %v806 = vunpack.c.l.b16 %v274
    %v807 = vunpack.c.h.b16 %v274
    %v808 = vunpack.c.l.b16 %v275
    %v809 = vpack.c.b16 %v518, %v515
    %v810 = vpack.c.b16 %v519, %v516
    %v811 = vpack.c.b16 %v520, %v517
    %v812 = vpack.c.b16 %v524, %v521
    %v813 = vpack.c.b16 %v525, %v522
    %v814 = vpack.c.b16 %v526, %v523
    %v815 = vpack.c.b16 %v530, %v527
    %v816 = vpack.c.b16 %v531, %v528
    %v817 = vpack.c.b16 %v532, %v529
    %v818 = vpack.c.b16 %v536, %v533
    %v819 = vpack.c.b16 %v537, %v534
    %v820 = vpack.c.b16 %v538, %v535
    %v821 = vpack.c.b16 %v542, %v539
    %v822 = vpack.c.b16 %v543, %v540
    %v823 = vpack.c.b16 %v544, %v541
    %v824 = vpack.c.b16 %v548, %v545
    %v825 = vpack.c.b16 %v549, %v546
    %v826 = vpack.c.b16 %v550, %v547
    %v827 = vpack.c.b16 %v554, %v551
    %v828 = vpack.c.b16 %v555, %v552
    %v829 = vpack.c.b16 %v556, %v553
    %v830 = vpack.c.b16 %v560, %v557
    %v831 = vpack.c.b16 %v561, %v558
    %v832 = vpack.c.b16 %v562, %v559
    %v833 = vpack.c.b16 %v566, %v563
    %v834 = vpack.c.b16 %v567, %v564
    %v835 = vpack.c.b16 %v568, %v565
    %v836 = vpack.c.b16 %v572, %v569
    %v837 = vpack.c.b16 %v573, %v570
    %v838 = vpack.c.b16 %v574, %v571
    %v839 = vpack.c.b16 %v578, %v575
    %v840 = vpack.c.b16 %v579, %v576
    %v841 = vpack.c.b16 %v580, %v577
    %v842 = vpack.c.b16 %v584, %v581
    %v843 = vpack.c.b16 %v585, %v582
    %v844 = vpack.c.b16 %v586, %v583
    %v845 = vpack.c.b16 %v590, %v587
    %v846 = vpack.c.b16 %v591, %v588
    %v847 = vpack.c.b16 %v592, %v589
    %v848 = vpack.c.b16 %v596, %v593
    %v849 = vpack.c.b16 %v597, %v594
    %v850 = vpack.c.b16 %v598, %v595
    %v851 = vpack.c.b16 %v602, %v599
    %v852 = vpack.c.b16 %v603, %v600
    %v853 = vpack.c.b16 %v604, %v601
    %v854 = vpack.c.b16 %v608, %v605
    %v855 = vpack.c.b16 %v609, %v606
    %v856 = vpack.c.b16 %v610, %v607
    %v857 = vpack.c.b16 %v614, %v611
    %v858 = vpack.c.b16 %v615, %v612
    %v859 = vpack.c.b16 %v616, %v613
    %v860 = vpack.c.b16 %v620, %v617
    %v861 = vpack.c.b16 %v621, %v618
    %v862 = vpack.c.b16 %v622, %v619
    %v863 = vpack.c.b16 %v626, %v623
    %v864 = vpack.c.b16 %v627, %v624
    %v865 = vpack.c.b16 %v628, %v625
    %v866 = vpack.c.b16 %v632, %v629
    %v867 = vpack.c.b16 %v633, %v630
    %v868 = vpack.c.b16 %v634, %v631
    %v869 = vpack.c.b16 %v638, %v635
    %v870 = vpack.c.b16 %v639, %v636
    %v871 = vpack.c.b16 %v640, %v637
    %v872 = vpack.c.b16 %v644, %v641
    %v873 = vpack.c.b16 %v645, %v642
    %v874 = vpack.c.b16 %v646, %v643
    %v875 = vpack.c.b16 %v650, %v647
    %v876 = vpack.c.b16 %v651, %v648
    %v877 = vpack.c.b16 %v652, %v649
    %v878 = vpack.c.b16 %v656, %v653
    %v879 = vpack.c.b16 %v657, %v654
    %v880 = vpack.c.b16 %v658, %v655
    %v881 = vpack.c.b16 %v662, %v659
    %v882 = vpack.c.b16 %v663, %v660
    %v883 = vpack.c.b16 %v664, %v661
    %v884 = vpack.c.b16 %v668, %v665
    %v885 = vpack.c.b16 %v669, %v666
    %v886 = vpack.c.b16 %v670, %v667
    %v887 = vpack.c.b16 %v674, %v671
    %v888 = vpack.c.b16 %v675, %v672
    %v889 = vpack.c.b16 %v676, %v673
    %v890 = vpack.c.b16 %v680, %v677
    %v891 = vpack.c.b16 %v681, %v678
    %v892 = vpack.c.b16 %v682, %v679
    %v893 = vpack.c.b16 %v686, %v683
    %v894 = vpack.c.b16 %v687, %v684
    %v895 = vpack.c.b16 %v688, %v685
    %v896 = vpack.c.b16 %v692, %v689
    %v897 = vpack.c.b16 %v693, %v690
    %v898 = vpack.c.b16 %v694, %v691
    %v899 = vpack.c.b16 %v698, %v695
    %v900 = vpack.c.b16 %v699, %v696
    %v901 = vpack.c.b16 %v700, %v697
    %v902 = vpack.c.b16 %v704, %v701
    %v903 = vpack.c.b16 %v705, %v702
    %v904 = vpack.c.b16 %v706, %v703
    %v905 = vpack.c.b16 %v710, %v707
    %v906 = vpack.c.b16 %v711, %v708
    %v907 = vpack.c.b16 %v712, %v709
    %v908 = vpack.c.b16 %v716, %v713
    %v909 = vpack.c.b16 %v717, %v714
    %v910 = vpack.c.b16 %v718, %v715
    %v911 = vpack.c.b16 %v722, %v719
    %v912 = vpack.c.b16 %v723, %v720
    %v913 = vpack.c.b16 %v724, %v721
    %v914 = vpack.c.b16 %v728, %v725
    %v915 = vpack.c.b16 %v729, %v726
    %v916 = vpack.c.b16 %v730, %v727
    %v917 = vpack.c.b16 %v734, %v731
    %v918 = vpack.c.b16 %v735, %v732
    %v919 = vpack.c.b16 %v736, %v733
    %v920 = vpack.c.b16 %v740, %v737
    %v921 = vpack.c.b16 %v741, %v738
    %v922 = vpack.c.b16 %v742, %v739
    %v923 = vpack.c.b16 %v746, %v743
    %v924 = vpack.c.b16 %v747, %v744
    %v925 = vpack.c.b16 %v748, %v745
    %v926 = vpack.c.b16 %v752, %v749
    %v927 = vpack.c.b16 %v753, %v750
    %v928 = vpack.c.b16 %v754, %v751
    %v929 = vpack.c.b16 %v758, %v755
    %v930 = vpack.c.b16 %v759, %v756
    %v931 = vpack.c.b16 %v760, %v757
    %v932 = vpack.c.b16 %v764, %v761
    %v933 = vpack.c.b16 %v765, %v762
    %v934 = vpack.c.b16 %v766, %v763
    %v935 = vpack.c.b16 %v770, %v767
    %v936 = vpack.c.b16 %v771, %v768
    %v937 = vpack.c.b16 %v772, %v769
    %v938 = vpack.c.b16 %v776, %v773
    %v939 = vpack.c.b16 %v777, %v774
    %v940 = vpack.c.b16 %v778, %v775
    %v941 = vpack.c.b16 %v782, %v779
    %v942 = vpack.c.b16 %v783, %v780
    %v943 = vpack.c.b16 %v784, %v781
    %v944 = vpack.c.b16 %v788, %v785
    %v945 = vpack.c.b16 %v789, %v786
    %v946 = vpack.c.b16 %v790, %v787
    %v947 = vpack.c.b16 %v794, %v791
    %v948 = vpack.c.b16 %v795, %v792
    %v949 = vpack.c.b16 %v796, %v793
    %v950 = vpack.c.b16 %v800, %v797
    %v951 = vpack.c.b16 %v801, %v798
    %v952 = vpack.c.b16 %v802, %v799
    %v953 = vpack.c.b16 %v806, %v803
    %v954 = vpack.c.b16 %v807, %v804
    %v955 = vpack.c.b16 %v808, %v805
    %vm1103 = vcmask 130048
    %v1105 = vsel %vm1103, %v312, 0
    %1107 = vmatpush.bf16.msra.mxu0 %v830
    %1108 = vmatpush.bf16.msra.mxu0 %v827
    %1109 = vmatpush.bf16.msra.mxu0 %v824
    %1110 = vmatpush.bf16.msra.mxu0 %v821
    %1111 = vmatpush.bf16.msra.mxu0 %v818
    %1112 = vmatpush.bf16.msra.mxu0 %v815
    %1113 = vmatpush.bf16.msra.mxu0 %v812
    %1114 = vmatpush.bf16.msra.mxu0 %v809
    %1115 = vmatmul.bf16.gmra.mxu0 %v306
    %v1116 = vpop.f32.mrf.mxu0
    %v1117 = vadd.f32 %v278, %v1116
    %v1118 = vpop.f32.mrf.mxu0
    %v1119 = vadd.f32 %v278, %v1118
    %1120 = vdwg.mxu0
    %1121 = vmatpush.bf16.msra.mxu0 %v854
    %1122 = vmatpush.bf16.msra.mxu0 %v851
    %1123 = vmatpush.bf16.msra.mxu0 %v848
    %1124 = vmatpush.bf16.msra.mxu0 %v845
    %1125 = vmatpush.bf16.msra.mxu0 %v842
    %1126 = vmatpush.bf16.msra.mxu0 %v839
    %1127 = vmatpush.bf16.msra.mxu0 %v836
    %1128 = vmatpush.bf16.msra.mxu0 %v833
    %1129 = vmatmul.bf16.gmra.mxu0 %v307
    %v1130 = vpop.f32.mrf.mxu0
    %v1131 = vadd.f32 %v1117, %v1130
    %v1132 = vpop.f32.mrf.mxu0
    %v1133 = vadd.f32 %v1119, %v1132
    %1134 = vdwg.mxu0
    %1135 = vmatpush.bf16.msra.mxu0 %v878
    %1136 = vmatpush.bf16.msra.mxu0 %v875
    %1137 = vmatpush.bf16.msra.mxu0 %v872
    %1138 = vmatpush.bf16.msra.mxu0 %v869
    %1139 = vmatpush.bf16.msra.mxu0 %v866
    %1140 = vmatpush.bf16.msra.mxu0 %v863
    %1141 = vmatpush.bf16.msra.mxu0 %v860
    %1142 = vmatpush.bf16.msra.mxu0 %v857
    %1143 = vmatmul.bf16.gmra.mxu0 %v308
    %v1144 = vpop.f32.mrf.mxu0
    %v1145 = vadd.f32 %v1131, %v1144
    %v1146 = vpop.f32.mrf.mxu0
    %v1147 = vadd.f32 %v1133, %v1146
    %1148 = vdwg.mxu0
    %1149 = vmatpush.bf16.msra.mxu0 %v902
    %1150 = vmatpush.bf16.msra.mxu0 %v899
    %1151 = vmatpush.bf16.msra.mxu0 %v896
    %1152 = vmatpush.bf16.msra.mxu0 %v893
    %1153 = vmatpush.bf16.msra.mxu0 %v890
    %1154 = vmatpush.bf16.msra.mxu0 %v887
    %1155 = vmatpush.bf16.msra.mxu0 %v884
    %1156 = vmatpush.bf16.msra.mxu0 %v881
    %1157 = vmatmul.bf16.gmra.mxu0 %v309
    %v1158 = vpop.f32.mrf.mxu0
    %v1159 = vadd.f32 %v1145, %v1158
    %v1160 = vpop.f32.mrf.mxu0
    %v1161 = vadd.f32 %v1147, %v1160
    %1162 = vdwg.mxu0
    %1163 = vmatpush.bf16.msra.mxu0 %v926
    %1164 = vmatpush.bf16.msra.mxu0 %v923
    %1165 = vmatpush.bf16.msra.mxu0 %v920
    %1166 = vmatpush.bf16.msra.mxu0 %v917
    %1167 = vmatpush.bf16.msra.mxu0 %v914
    %1168 = vmatpush.bf16.msra.mxu0 %v911
    %1169 = vmatpush.bf16.msra.mxu0 %v908
    %1170 = vmatpush.bf16.msra.mxu0 %v905
    %1171 = vmatmul.bf16.gmra.mxu0 %v310
    %v1172 = vpop.f32.mrf.mxu0
    %v1173 = vadd.f32 %v1159, %v1172
    %v1174 = vpop.f32.mrf.mxu0
    %v1175 = vadd.f32 %v1161, %v1174
    %1176 = vdwg.mxu0
    %1177 = vmatpush.bf16.msra.mxu0 %v950
    %1178 = vmatpush.bf16.msra.mxu0 %v947
    %1179 = vmatpush.bf16.msra.mxu0 %v944
    %1180 = vmatpush.bf16.msra.mxu0 %v941
    %1181 = vmatpush.bf16.msra.mxu0 %v938
    %1182 = vmatpush.bf16.msra.mxu0 %v935
    %1183 = vmatpush.bf16.msra.mxu0 %v932
    %1184 = vmatpush.bf16.msra.mxu0 %v929
    %1185 = vmatmul.bf16.gmra.mxu0 %v311
    %v1186 = vpop.f32.mrf.mxu0
    %v1187 = vadd.f32 %v1173, %v1186
    %v1188 = vpop.f32.mrf.mxu0
    %v1189 = vadd.f32 %v1175, %v1188
    %1190 = vdwg.mxu0
    %1191 = vmatpush.bf16.msra.mxu0 0
    %1192 = vmatpush.bf16.msra.mxu0 0
    %1193 = vmatpush.bf16.msra.mxu0 0
    %1194 = vmatpush.bf16.msra.mxu0 0
    %1195 = vmatpush.bf16.msra.mxu0 0
    %1196 = vmatpush.bf16.msra.mxu0 0
    %1197 = vmatpush.bf16.msra.mxu0 0
    %1198 = vmatpush.bf16.msra.mxu0 %v953
    %1199 = vmatmul.bf16.gmra.mxu0 %v1105
    %v1200 = vpop.f32.mrf.mxu0
    %v1201 = vadd.f32 %v1187, %v1200
    %v1202 = vpop.f32.mrf.mxu0
    %v1203 = vadd.f32 %v1189, %v1202
    %1204 = vdwg.mxu0
    %1205 = vmatpush.bf16.msra.mxu0 %v831
    %1206 = vmatpush.bf16.msra.mxu0 %v828
    %1207 = vmatpush.bf16.msra.mxu0 %v825
    %1208 = vmatpush.bf16.msra.mxu0 %v822
    %1209 = vmatpush.bf16.msra.mxu0 %v819
    %1210 = vmatpush.bf16.msra.mxu0 %v816
    %1211 = vmatpush.bf16.msra.mxu0 %v813
    %1212 = vmatpush.bf16.msra.mxu0 %v810
    %1213 = vmatmul.bf16.gmra.mxu0 %v306
    %v1214 = vpop.f32.mrf.mxu0
    %v1215 = vadd.f32 %v279, %v1214
    %v1216 = vpop.f32.mrf.mxu0
    %v1217 = vadd.f32 %v279, %v1216
    %1218 = vdwg.mxu0
    %1219 = vmatpush.bf16.msra.mxu0 %v855
    %1220 = vmatpush.bf16.msra.mxu0 %v852
    %1221 = vmatpush.bf16.msra.mxu0 %v849
    %1222 = vmatpush.bf16.msra.mxu0 %v846
    %1223 = vmatpush.bf16.msra.mxu0 %v843
    %1224 = vmatpush.bf16.msra.mxu0 %v840
    %1225 = vmatpush.bf16.msra.mxu0 %v837
    %1226 = vmatpush.bf16.msra.mxu0 %v834
    %1227 = vmatmul.bf16.gmra.mxu0 %v307
    %v1228 = vpop.f32.mrf.mxu0
    %v1229 = vadd.f32 %v1215, %v1228
    %v1230 = vpop.f32.mrf.mxu0
    %v1231 = vadd.f32 %v1217, %v1230
    %1232 = vdwg.mxu0
    %1233 = vmatpush.bf16.msra.mxu0 %v879
    %1234 = vmatpush.bf16.msra.mxu0 %v876
    %1235 = vmatpush.bf16.msra.mxu0 %v873
    %1236 = vmatpush.bf16.msra.mxu0 %v870
    %1237 = vmatpush.bf16.msra.mxu0 %v867
    %1238 = vmatpush.bf16.msra.mxu0 %v864
    %1239 = vmatpush.bf16.msra.mxu0 %v861
    %1240 = vmatpush.bf16.msra.mxu0 %v858
    %1241 = vmatmul.bf16.gmra.mxu0 %v308
    %v1242 = vpop.f32.mrf.mxu0
    %v1243 = vadd.f32 %v1229, %v1242
    %v1244 = vpop.f32.mrf.mxu0
    %v1245 = vadd.f32 %v1231, %v1244
    %1246 = vdwg.mxu0
    %1247 = vmatpush.bf16.msra.mxu0 %v903
    %1248 = vmatpush.bf16.msra.mxu0 %v900
    %1249 = vmatpush.bf16.msra.mxu0 %v897
    %1250 = vmatpush.bf16.msra.mxu0 %v894
    %1251 = vmatpush.bf16.msra.mxu0 %v891
    %1252 = vmatpush.bf16.msra.mxu0 %v888
    %1253 = vmatpush.bf16.msra.mxu0 %v885
    %1254 = vmatpush.bf16.msra.mxu0 %v882
    %1255 = vmatmul.bf16.gmra.mxu0 %v309
    %v1256 = vpop.f32.mrf.mxu0
    %v1257 = vadd.f32 %v1243, %v1256
    %v1258 = vpop.f32.mrf.mxu0
    %v1259 = vadd.f32 %v1245, %v1258
    %1260 = vdwg.mxu0
    %1261 = vmatpush.bf16.msra.mxu0 %v927
    %1262 = vmatpush.bf16.msra.mxu0 %v924
    %1263 = vmatpush.bf16.msra.mxu0 %v921
    %1264 = vmatpush.bf16.msra.mxu0 %v918
    %1265 = vmatpush.bf16.msra.mxu0 %v915
    %1266 = vmatpush.bf16.msra.mxu0 %v912
    %1267 = vmatpush.bf16.msra.mxu0 %v909
    %1268 = vmatpush.bf16.msra.mxu0 %v906
    %1269 = vmatmul.bf16.gmra.mxu0 %v310
    %v1270 = vpop.f32.mrf.mxu0
    %v1271 = vadd.f32 %v1257, %v1270
    %v1272 = vpop.f32.mrf.mxu0
    %v1273 = vadd.f32 %v1259, %v1272
    %1274 = vdwg.mxu0
    %1275 = vmatpush.bf16.msra.mxu0 %v951
    %1276 = vmatpush.bf16.msra.mxu0 %v948
    %1277 = vmatpush.bf16.msra.mxu0 %v945
    %1278 = vmatpush.bf16.msra.mxu0 %v942
    %1279 = vmatpush.bf16.msra.mxu0 %v939
    %1280 = vmatpush.bf16.msra.mxu0 %v936
    %1281 = vmatpush.bf16.msra.mxu0 %v933
    %1282 = vmatpush.bf16.msra.mxu0 %v930
    %1283 = vmatmul.bf16.gmra.mxu0 %v311
    %v1284 = vpop.f32.mrf.mxu0
    %v1285 = vadd.f32 %v1271, %v1284
    %v1286 = vpop.f32.mrf.mxu0
    %v1287 = vadd.f32 %v1273, %v1286
    %1288 = vdwg.mxu0
    %1289 = vmatpush.bf16.msra.mxu0 0
    %1290 = vmatpush.bf16.msra.mxu0 0
    %1291 = vmatpush.bf16.msra.mxu0 0
    %1292 = vmatpush.bf16.msra.mxu0 0
    %1293 = vmatpush.bf16.msra.mxu0 0
    %1294 = vmatpush.bf16.msra.mxu0 0
    %1295 = vmatpush.bf16.msra.mxu0 0
    %1296 = vmatpush.bf16.msra.mxu0 %v954
    %1297 = vmatmul.bf16.gmra.mxu0 %v1105
    %v1298 = vpop.f32.mrf.mxu0
    %v1299 = vadd.f32 %v1285, %v1298
    %v1300 = vpop.f32.mrf.mxu0
    %v1301 = vadd.f32 %v1287, %v1300
    %1302 = vdwg.mxu0
    %1303 = vmatpush.bf16.msra.mxu0 %v832
    %1304 = vmatpush.bf16.msra.mxu0 %v829
    %1305 = vmatpush.bf16.msra.mxu0 %v826
    %1306 = vmatpush.bf16.msra.mxu0 %v823
    %1307 = vmatpush.bf16.msra.mxu0 %v820
    %1308 = vmatpush.bf16.msra.mxu0 %v817
    %1309 = vmatpush.bf16.msra.mxu0 %v814
    %1310 = vmatpush.bf16.msra.mxu0 %v811
    %1311 = vmatmul.bf16.gmra.mxu0 %v306
    %v1312 = vpop.f32.mrf.mxu0
    %v1313 = vadd.f32 %v280, %v1312
    %v1314 = vpop.f32.mrf.mxu0
    %v1315 = vadd.f32 %v280, %v1314
    %1316 = vdwg.mxu0
    %1317 = vmatpush.bf16.msra.mxu0 %v856
    %1318 = vmatpush.bf16.msra.mxu0 %v853
    %1319 = vmatpush.bf16.msra.mxu0 %v850
    %1320 = vmatpush.bf16.msra.mxu0 %v847
    %1321 = vmatpush.bf16.msra.mxu0 %v844
    %1322 = vmatpush.bf16.msra.mxu0 %v841
    %1323 = vmatpush.bf16.msra.mxu0 %v838
    %1324 = vmatpush.bf16.msra.mxu0 %v835
    %1325 = vmatmul.bf16.gmra.mxu0 %v307
    %v1326 = vpop.f32.mrf.mxu0
    %v1327 = vadd.f32 %v1313, %v1326
    %v1328 = vpop.f32.mrf.mxu0
    %v1329 = vadd.f32 %v1315, %v1328
    %1330 = vdwg.mxu0
    %1331 = vmatpush.bf16.msra.mxu0 %v880
    %1332 = vmatpush.bf16.msra.mxu0 %v877
    %1333 = vmatpush.bf16.msra.mxu0 %v874
    %1334 = vmatpush.bf16.msra.mxu0 %v871
    %1335 = vmatpush.bf16.msra.mxu0 %v868
    %1336 = vmatpush.bf16.msra.mxu0 %v865
    %1337 = vmatpush.bf16.msra.mxu0 %v862
    %1338 = vmatpush.bf16.msra.mxu0 %v859
    %1339 = vmatmul.bf16.gmra.mxu0 %v308
    %v1340 = vpop.f32.mrf.mxu0
    %v1341 = vadd.f32 %v1327, %v1340
    %v1342 = vpop.f32.mrf.mxu0
    %v1343 = vadd.f32 %v1329, %v1342
    %1344 = vdwg.mxu0
    %1345 = vmatpush.bf16.msra.mxu0 %v904
    %1346 = vmatpush.bf16.msra.mxu0 %v901
    %1347 = vmatpush.bf16.msra.mxu0 %v898
    %1348 = vmatpush.bf16.msra.mxu0 %v895
    %1349 = vmatpush.bf16.msra.mxu0 %v892
    %1350 = vmatpush.bf16.msra.mxu0 %v889
    %1351 = vmatpush.bf16.msra.mxu0 %v886
    %1352 = vmatpush.bf16.msra.mxu0 %v883
    %1353 = vmatmul.bf16.gmra.mxu0 %v309
    %v1354 = vpop.f32.mrf.mxu0
    %v1355 = vadd.f32 %v1341, %v1354
    %v1356 = vpop.f32.mrf.mxu0
    %v1357 = vadd.f32 %v1343, %v1356
    %1358 = vdwg.mxu0
    %1359 = vmatpush.bf16.msra.mxu0 %v928
    %1360 = vmatpush.bf16.msra.mxu0 %v925
    %1361 = vmatpush.bf16.msra.mxu0 %v922
    %1362 = vmatpush.bf16.msra.mxu0 %v919
    %1363 = vmatpush.bf16.msra.mxu0 %v916
    %1364 = vmatpush.bf16.msra.mxu0 %v913
    %1365 = vmatpush.bf16.msra.mxu0 %v910
    %1366 = vmatpush.bf16.msra.mxu0 %v907
    %1367 = vmatmul.bf16.gmra.mxu0 %v310
    %v1368 = vpop.f32.mrf.mxu0
    %v1369 = vadd.f32 %v1355, %v1368
    %v1370 = vpop.f32.mrf.mxu0
    %v1371 = vadd.f32 %v1357, %v1370
    %1372 = vdwg.mxu0
    %1373 = vmatpush.bf16.msra.mxu0 %v952
    %1374 = vmatpush.bf16.msra.mxu0 %v949
    %1375 = vmatpush.bf16.msra.mxu0 %v946
    %1376 = vmatpush.bf16.msra.mxu0 %v943
    %1377 = vmatpush.bf16.msra.mxu0 %v940
    %1378 = vmatpush.bf16.msra.mxu0 %v937
    %1379 = vmatpush.bf16.msra.mxu0 %v934
    %1380 = vmatpush.bf16.msra.mxu0 %v931
    %1381 = vmatmul.bf16.gmra.mxu0 %v311
    %v1382 = vpop.f32.mrf.mxu0
    %v1383 = vadd.f32 %v1369, %v1382
    %v1384 = vpop.f32.mrf.mxu0
    %v1385 = vadd.f32 %v1371, %v1384
    %1386 = vdwg.mxu0
    %1387 = vmatpush.bf16.msra.mxu0 0
    %1388 = vmatpush.bf16.msra.mxu0 0
    %1389 = vmatpush.bf16.msra.mxu0 0
    %1390 = vmatpush.bf16.msra.mxu0 0
    %1391 = vmatpush.bf16.msra.mxu0 0
    %1392 = vmatpush.bf16.msra.mxu0 0
    %1393 = vmatpush.bf16.msra.mxu0 0
    %1394 = vmatpush.bf16.msra.mxu0 %v955
    %1395 = vmatmul.bf16.gmra.mxu0 %v1105
    %v1396 = vpop.f32.mrf.mxu0
    %v1397 = vadd.f32 %v1383, %v1396
    %v1398 = vpop.f32.mrf.mxu0
    %v1399 = vadd.f32 %v1385, %v1398
    %1400 = vdwg.mxu0
    %v1401 = vmax.f32 %v1201, 0.0
    %v1402 = vmax.f32 %v1299, 0.0
    %v1403 = vmax.f32 %v1397, 0.0
    %v1404 = vmax.f32 %v1203, 0.0
    %v1405 = vmax.f32 %v1301, 0.0
    %v1406 = vmax.f32 %v1399, 0.0
    %v1407 = vpack.c.bf16 %v1404, %v1401
    %v1408 = vpack.c.bf16 %v1405, %v1402
    %v1409 = vpack.c.bf16 %v1406, %v1403
    %v1410 = vld [vmem:[%s3] sm:$0xf]
    %v1411 = vld [vmem:[%s3 + $0x4] sm:$0xf]
    %v1412 = vld [vmem:[%s3 + $0x8] sm:$0xf]
    %v1413 = vld [vmem:[%s3 + $0xc] sm:$0xf]
    %v1414 = vld [vmem:[%s3 + $0x10] sm:$0xf]
    %v1415 = vld [vmem:[%s3 + $0x14] sm:$0xf]
    %v1416 = vld [vmem:[%s3 + $0x18] sm:$0xf]
    %v1417 = vld [vmem:[%s3 + $0x1c] sm:$0xf]
    %v1418 = vld [vmem:[%s3 + $0x20] sm:$0xf]
    %v1419 = vld [vmem:[%s3 + $0x24] sm:$0xf]
    %v1420 = vld [vmem:[%s3 + $0x28] sm:$0xf]
    %v1421 = vld [vmem:[%s3 + $0x2c] sm:$0xf]
    %v1422 = vld [vmem:[%s3 + $0x30] sm:$0xf]
    %v1423 = vld [vmem:[%s3 + $0x34] sm:$0xf]
    %v1424 = vld [vmem:[%s3 + $0x38] sm:$0xf]
    %v1425 = vld [vmem:[%s3 + $0x3c] sm:$0xf]
    %v1426 = vld [vmem:[%s3 + $0x40] sm:$0xf]
    %v1427 = vld [vmem:[%s3 + $0x44] sm:$0xf]
    %v1428 = vld [vmem:[%s3 + $0x48] sm:$0xf]
    %v1429 = vld [vmem:[%s3 + $0x4c] sm:$0xf]
    %v1430 = vld [vmem:[%s3 + $0x50] sm:$0xf]
    %v1431 = vld [vmem:[%s3 + $0x54] sm:$0xf]
    %v1432 = vld [vmem:[%s3 + $0x58] sm:$0xf]
    %v1433 = vld [vmem:[%s3 + $0x5c] sm:$0xf]
    %v1434 = vld [vmem:[%s3 + $0x60] sm:$0xf]
    %v1435 = vld [vmem:[%s3 + $0x64] sm:$0xf]
    %v1436 = vld [vmem:[%s3 + $0x68] sm:$0xf]
    %v1437 = vld [vmem:[%s3 + $0x6c] sm:$0xf]
    %v1438 = vld [vmem:[%s3 + $0x70] sm:$0xf]
    %v1439 = vld [vmem:[%s3 + $0x74] sm:$0xf]
    %v1440 = vld [vmem:[%s3 + $0x78] sm:$0xf]
    %v1441 = vld [vmem:[%s3 + $0x7c] sm:$0xf]
    %v1442 = vld [vmem:[%s3 + $0x80] sm:$0xf]
    %v1443 = vld [vmem:[%s3 + $0x84] sm:$0xf]
    %v1444 = vld [vmem:[%s3 + $0x88] sm:$0xf]
    %v1445 = vld [vmem:[%s3 + $0x8c] sm:$0xf]
    %v1446 = vld [vmem:[%s3 + $0x90] sm:$0xf]
    %v1447 = vld [vmem:[%s3 + $0x94] sm:$0xf]
    %v1448 = vld [vmem:[%s3 + $0x98] sm:$0xf]
    %v1449 = vld [vmem:[%s3 + $0x9c] sm:$0xf]
    %v1450 = vld [vmem:[%s3 + $0xa0] sm:$0xf]
    %v1451 = vld [vmem:[%s3 + $0xa4] sm:$0xf]
    %v1452 = vld [vmem:[%s3 + $0xa8] sm:$0xf]
    %v1453 = vld [vmem:[%s3 + $0xac] sm:$0xf]
    %v1454 = vld [vmem:[%s3 + $0xb0] sm:$0xf]
    %v1455 = vld [vmem:[%s3 + $0xb4] sm:$0xf]
    %v1456 = vld [vmem:[%s3 + $0xb8] sm:$0xf]
    %v1457 = vld [vmem:[%s3 + $0xbc] sm:$0xf]
    %v1458 = vld [vmem:[%s4] sm:$0x1]
    %v1460 = vperm.slane %v1458, 0
    %v1510 = vunpack.c.l.b16 %v1410
    %v1511 = vunpack.c.l.b16 %v1411
    %v1512 = vunpack.c.l.b16 %v1412
    %v1513 = vunpack.c.l.b16 %v1413
    %v1514 = vunpack.c.l.b16 %v1414
    %v1515 = vunpack.c.l.b16 %v1415
    %v1516 = vunpack.c.l.b16 %v1416
    %v1517 = vunpack.c.l.b16 %v1417
    %v1518 = vunpack.c.l.b16 %v1418
    %v1519 = vunpack.c.l.b16 %v1419
    %v1520 = vunpack.c.l.b16 %v1420
    %v1521 = vunpack.c.l.b16 %v1421
    %v1522 = vunpack.c.l.b16 %v1422
    %v1523 = vunpack.c.l.b16 %v1423
    %v1524 = vunpack.c.l.b16 %v1424
    %v1525 = vunpack.c.l.b16 %v1425
    %v1526 = vunpack.c.l.b16 %v1426
    %v1527 = vunpack.c.l.b16 %v1427
    %v1528 = vunpack.c.l.b16 %v1428
    %v1529 = vunpack.c.l.b16 %v1429
    %v1530 = vunpack.c.l.b16 %v1430
    %v1531 = vunpack.c.l.b16 %v1431
    %v1532 = vunpack.c.l.b16 %v1432
    %v1533 = vunpack.c.l.b16 %v1433
    %v1534 = vunpack.c.l.b16 %v1434
    %v1535 = vunpack.c.l.b16 %v1435
    %v1536 = vunpack.c.l.b16 %v1436
    %v1537 = vunpack.c.l.b16 %v1437
    %v1538 = vunpack.c.l.b16 %v1438
    %v1539 = vunpack.c.l.b16 %v1439
    %v1540 = vunpack.c.l.b16 %v1440
    %v1541 = vunpack.c.l.b16 %v1441
    %v1542 = vunpack.c.l.b16 %v1442
    %v1543 = vunpack.c.l.b16 %v1443
    %v1544 = vunpack.c.l.b16 %v1444
    %v1545 = vunpack.c.l.b16 %v1445
    %v1546 = vunpack.c.l.b16 %v1446
    %v1547 = vunpack.c.l.b16 %v1447
    %v1548 = vunpack.c.l.b16 %v1448
    %v1549 = vunpack.c.l.b16 %v1449
    %v1550 = vunpack.c.l.b16 %v1450
    %v1551 = vunpack.c.l.b16 %v1451
    %v1552 = vunpack.c.l.b16 %v1452
    %v1553 = vunpack.c.l.b16 %v1453
    %v1554 = vunpack.c.l.b16 %v1454
    %v1555 = vunpack.c.l.b16 %v1455
    %v1556 = vunpack.c.l.b16 %v1456
    %v1557 = vunpack.c.l.b16 %v1457
    %v1558 = vpack.c.b16 %v1511, %v1510
    %v1559 = vpack.c.b16 %v1513, %v1512
    %v1560 = vpack.c.b16 %v1515, %v1514
    %v1561 = vpack.c.b16 %v1517, %v1516
    %v1562 = vpack.c.b16 %v1519, %v1518
    %v1563 = vpack.c.b16 %v1521, %v1520
    %v1564 = vpack.c.b16 %v1523, %v1522
    %v1565 = vpack.c.b16 %v1525, %v1524
    %v1566 = vpack.c.b16 %v1527, %v1526
    %v1567 = vpack.c.b16 %v1529, %v1528
    %v1568 = vpack.c.b16 %v1531, %v1530
    %v1569 = vpack.c.b16 %v1533, %v1532
    %v1570 = vpack.c.b16 %v1535, %v1534
    %v1571 = vpack.c.b16 %v1537, %v1536
    %v1572 = vpack.c.b16 %v1539, %v1538
    %v1573 = vpack.c.b16 %v1541, %v1540
    %v1574 = vpack.c.b16 %v1543, %v1542
    %v1575 = vpack.c.b16 %v1545, %v1544
    %v1576 = vpack.c.b16 %v1547, %v1546
    %v1577 = vpack.c.b16 %v1549, %v1548
    %v1578 = vpack.c.b16 %v1551, %v1550
    %v1579 = vpack.c.b16 %v1553, %v1552
    %v1580 = vpack.c.b16 %v1555, %v1554
    %v1581 = vpack.c.b16 %v1557, %v1556
    %1606 = vmatpush.bf16.msra.mxu0 %v1565
    %1607 = vmatpush.bf16.msra.mxu0 %v1564
    %1608 = vmatpush.bf16.msra.mxu0 %v1563
    %1609 = vmatpush.bf16.msra.mxu0 %v1562
    %1610 = vmatpush.bf16.msra.mxu0 %v1561
    %1611 = vmatpush.bf16.msra.mxu0 %v1560
    %1612 = vmatpush.bf16.msra.mxu0 %v1559
    %1613 = vmatpush.bf16.msra.mxu0 %v1558
    %1614 = vmatmul.bf16.gmra.mxu0 %v1407
    %v1615 = vpop.f32.mrf.mxu0
    %v1616 = vadd.f32 %v1460, %v1615
    %v1617 = vpop.f32.mrf.mxu0
    %v1618 = vadd.f32 %v1460, %v1617
    %1619 = vdwg.mxu0
    %1620 = vmatpush.bf16.msra.mxu0 %v1573
    %1621 = vmatpush.bf16.msra.mxu0 %v1572
    %1622 = vmatpush.bf16.msra.mxu0 %v1571
    %1623 = vmatpush.bf16.msra.mxu0 %v1570
    %1624 = vmatpush.bf16.msra.mxu0 %v1569
    %1625 = vmatpush.bf16.msra.mxu0 %v1568
    %1626 = vmatpush.bf16.msra.mxu0 %v1567
    %1627 = vmatpush.bf16.msra.mxu0 %v1566
    %1628 = vmatmul.bf16.gmra.mxu0 %v1408
    %v1629 = vpop.f32.mrf.mxu0
    %v1630 = vadd.f32 %v1616, %v1629
    %v1631 = vpop.f32.mrf.mxu0
    %v1632 = vadd.f32 %v1618, %v1631
    %1633 = vdwg.mxu0
    %1634 = vmatpush.bf16.msra.mxu0 %v1581
    %1635 = vmatpush.bf16.msra.mxu0 %v1580
    %1636 = vmatpush.bf16.msra.mxu0 %v1579
    %1637 = vmatpush.bf16.msra.mxu0 %v1578
    %1638 = vmatpush.bf16.msra.mxu0 %v1577
    %1639 = vmatpush.bf16.msra.mxu0 %v1576
    %1640 = vmatpush.bf16.msra.mxu0 %v1575
    %1641 = vmatpush.bf16.msra.mxu0 %v1574
    %1642 = vmatmul.bf16.gmra.mxu0 %v1409
    %v1643 = vpop.f32.mrf.mxu0
    %v1644 = vadd.f32 %v1630, %v1643
    %v1645 = vpop.f32.mrf.mxu0
    %v1646 = vadd.f32 %v1632, %v1645
    %1647 = vdwg.mxu0
    %v1648 = vmax.f32 %v1644, 0.0
    %v1649 = vmax.f32 %v1646, 0.0
    %v1650 = vpack.c.bf16 %v1649, %v1648
    %v1651 = vld [vmem:[#allocation6] sm:$0xf]
    %v1652 = vld [vmem:[#allocation6 + $0x4] sm:$0xf]
    %v1653 = vld [vmem:[#allocation6 + $0x8] sm:$0xf]
    %v1654 = vld [vmem:[#allocation6 + $0xc] sm:$0xf]
    %v1655 = vld [vmem:[#allocation6 + $0x10] sm:$0xf]
    %v1656 = vld [vmem:[#allocation6 + $0x14] sm:$0xf]
    %v1657 = vld [vmem:[#allocation6 + $0x18] sm:$0xf]
    %v1658 = vld [vmem:[#allocation6 + $0x1c] sm:$0xf]
    %v1659 = vld [vmem:[#allocation6 + $0x20] sm:$0xf]
    %v1660 = vld [vmem:[#allocation6 + $0x24] sm:$0xf]
    %v1661 = vld [vmem:[#allocation6 + $0x28] sm:$0xf]
    %v1662 = vld [vmem:[#allocation6 + $0x2c] sm:$0xf]
    %v1663 = vld [vmem:[#allocation6 + $0x30] sm:$0xf]
    %v1664 = vld [vmem:[#allocation6 + $0x34] sm:$0xf]
    %v1665 = vld [vmem:[#allocation6 + $0x38] sm:$0xf]
    %v1666 = vld [vmem:[#allocation6 + $0x3c] sm:$0xf]
    %v1667 = vld [vmem:[%s6] sm:$0x1]
    %v1669 = vperm.slane %v1667, 0
    %v1687 = vunpack.c.l.b16 %v1651
    %v1688 = vunpack.c.l.b16 %v1652
    %v1689 = vunpack.c.l.b16 %v1653
    %v1690 = vunpack.c.l.b16 %v1654
    %v1691 = vunpack.c.l.b16 %v1655
    %v1692 = vunpack.c.l.b16 %v1656
    %v1693 = vunpack.c.l.b16 %v1657
    %v1694 = vunpack.c.l.b16 %v1658
    %v1695 = vunpack.c.l.b16 %v1659
    %v1696 = vunpack.c.l.b16 %v1660
    %v1697 = vunpack.c.l.b16 %v1661
    %v1698 = vunpack.c.l.b16 %v1662
    %v1699 = vunpack.c.l.b16 %v1663
    %v1700 = vunpack.c.l.b16 %v1664
    %v1701 = vunpack.c.l.b16 %v1665
    %v1702 = vunpack.c.l.b16 %v1666
    %v1703 = vpack.c.b16 %v1688, %v1687
    %v1704 = vpack.c.b16 %v1690, %v1689
    %v1705 = vpack.c.b16 %v1692, %v1691
    %v1706 = vpack.c.b16 %v1694, %v1693
    %v1707 = vpack.c.b16 %v1696, %v1695
    %v1708 = vpack.c.b16 %v1698, %v1697
    %v1709 = vpack.c.b16 %v1700, %v1699
    %v1710 = vpack.c.b16 %v1702, %v1701
    %1719 = vmatpush.bf16.msra.mxu0 %v1710
    %1720 = vmatpush.bf16.msra.mxu0 %v1709
    %1721 = vmatpush.bf16.msra.mxu0 %v1708
    %1722 = vmatpush.bf16.msra.mxu0 %v1707
    %1723 = vmatpush.bf16.msra.mxu0 %v1706
    %1724 = vmatpush.bf16.msra.mxu0 %v1705
    %1725 = vmatpush.bf16.msra.mxu0 %v1704
    %1726 = vmatpush.bf16.msra.mxu0 %v1703
    %1727 = vmatmul.bf16.gmra.mxu0 %v1650
    %v1728 = vpop.f32.mrf.mxu0
    %v1729 = vadd.f32 %v1669, %v1728
    %v1730 = vpop.f32.mrf.mxu0
    %v1731 = vadd.f32 %v1669, %v1730
    %1732 = vdwg.mxu0
    %1733 = vst [vmem:[%s7] sm:$0xff] %v1729
    %1734 = vst [vmem:[%s7 + $0x8] sm:$0xff] %v1731
    // Predicated region
    $region42: #{lenet300_forward.1} parent=1 // pred_check
      _
    $region43: #{lenet300_forward.1} parent=1 // pred_check_branch
      %1736 = sbr.rel (0) target = $region45
    $region44: #{lenet300_forward.1} parent=1 // pred_region
      _
    $region45: #{lenet300_forward.1} parent=1 // pred_fallthru
      _
    // Predicated region
    $region46: #{lenet300_forward.1} parent=1 // pred_check
      _
    $region47: #{lenet300_forward.1} parent=1 // pred_check_branch
      %1738 = sbr.rel (0) target = $region49
    $region48: #{lenet300_forward.1} parent=1 // pred_region
      _
    $region49: #{lenet300_forward.1} parent=1 // pred_fallthru
      _
    %1739 = vsyncpa [#allocation3], 1
    %1740 = vsyncpa [#allocation5], 1

</llo_original>
